<compile_context>
chip_gen: v6e
topology: v6e:2x2x1
jax: 0.10.0
libtpu: 0.0.40
codegen_flags: <defaults>
</compile_context>

<pallas_src>
import functools

import jax
import jax.numpy as jnp
from jax.experimental import pallas as pl
from jax.experimental.pallas import tpu as pltpu


def _round_up(x: int, m: int) -> int:
    return ((x + m - 1) // m) * m


def _sublane_multiple(itemsize: int) -> int:
    # f32 -> 8, bf16 -> 16, int8/fp8 -> 32 (sub-32-bit dtypes pack along sublanes).
    return 8 * max(1, 4 // max(1, itemsize))


def _weighted_loss_kernel(lstm_ref, bert_ref, labels_ref, out_ref, *, num_rows: int):
    pid = pl.program_id(0)
    tb, c = lstm_ref.shape

    # Rows of the (possibly ragged) last block that fall past the real batch.
    row_ids = jax.lax.broadcasted_iota(jnp.int32, (tb, 1), 0) + pid * tb
    row_valid = row_ids < num_rows                                  # (TB, 1) bool

    # Sanitize BEFORE any square/exp: out-of-bounds rows may hold garbage and
    # jnp.where is a select (no 0*NaN hazard).
    x = jnp.where(row_valid, lstm_ref[...].astype(jnp.float32), 0.0)   # (TB, C)
    bt = jnp.where(row_valid, bert_ref[...].astype(jnp.float32), 0.0)  # (TB, C)

    # ---- SSE partial (invalid rows contribute exactly 0) --------------------
    diff = x - bt
    sse_sum = jnp.sum(diff * diff)

    # ---- Fused, numerically stable cross-entropy partial ---------------------
    lab = labels_ref[...]                                           # (TB, 1) int32
    class_ids = jax.lax.broadcasted_iota(jnp.int32, (tb, c), 1)     # (TB, C)
    z = x - jnp.max(x, axis=-1, keepdims=True)                      # (TB, C)
    lse = jnp.log(jnp.sum(jnp.exp(z), axis=-1, keepdims=True))      # (TB, 1)
    z_at_label = jnp.sum(jnp.where(class_ids == lab, z, 0.0),
                         axis=-1, keepdims=True)                    # (TB, 1)
    ce_sum = jnp.sum(jnp.where(row_valid, lse - z_at_label, 0.0))

    # Per-block UNSCALED partials, written as a full lane-dense (8,128) tile:
    # lane 0 -> ce_sum, lane 1 -> sse_sum, rest 0.  Final scaling on the host.
    lane = jax.lax.broadcasted_iota(jnp.int32, (1, 8, 128), 2)
    out_ref[...] = jnp.where(lane == 0, ce_sum,
                             jnp.where(lane == 1, sse_sum, 0.0))


def weighted_loss(lstm_logits, bert_logits, labels, a: float = 0.5):
    """lstm_logits: (B, C), bert_logits: (B, C), labels: (B,) int."""
    B, C = lstm_logits.shape
    isz_l = jnp.dtype(lstm_logits.dtype).itemsize
    isz_b = jnp.dtype(bert_logits.dtype).itemsize

    # Generation-aware VMEM budget (128 MiB on v5e/v6e, 64 MiB per TC on v7x).
    try:
        vmem_capacity = int(pltpu.get_tpu_info().vmem_capacity_bytes)
    except Exception:
        vmem_capacity = 64 * 1024 * 1024  # conservative fallback
    vmem_limit = (vmem_capacity * 3) // 4

    # Per-grid-step working set:
    #   2 inputs x 2 pipeline buffers in native dtype  +  ~3 (TB, C) f32 temps
    # Keep it under ~half the scoped limit for compiler/pipeline headroom.
    budget = vmem_limit // 2
    per_row_bytes = C * (2 * (isz_l + isz_b) + 3 * 4)
    row_align = max(_sublane_multiple(isz_l), _sublane_multiple(isz_b), 8)

    tb = (budget // max(1, per_row_bytes)) // row_align * row_align
    tb = max(row_align, tb)
    tb = min(tb, _round_up(B, row_align))
    grid = pl.cdiv(B, tb)

    labels_2d = labels.astype(jnp.int32).reshape(B, 1)

    kernel = functools.partial(_weighted_loss_kernel, num_rows=B)

    partials = pl.pallas_call(
        kernel,
        out_shape=jax.ShapeDtypeStruct((grid, 8, 128), jnp.float32),
        grid=(grid,),
        in_specs=[
            pl.BlockSpec((tb, C), lambda i: (i, 0)),
            pl.BlockSpec((tb, C), lambda i: (i, 0)),
            pl.BlockSpec((tb, 1), lambda i: (i, 0)),
        ],
        out_specs=pl.BlockSpec((1, 8, 128), lambda i: (i, 0, 0)),
        compiler_params=pltpu.CompilerParams(
            dimension_semantics=("parallel",),
            vmem_limit_bytes=vmem_limit,
        ),
    )(lstm_logits, bert_logits, labels_2d)

    ce_total = jnp.sum(partials[:, 0, 0])
    sse_total = jnp.sum(partials[:, 0, 1])
    a = jnp.float32(a)
    return (a / jnp.float32(B)) * ce_total + \
           ((jnp.float32(1.0) - a) / jnp.float32(B * C)) * sse_total


def _reference(lstm_logits, bert_logits, labels, a=0.5):
    logp = jax.nn.log_softmax(lstm_logits.astype(jnp.float32), axis=-1)
    ce = -jnp.mean(jnp.take_along_axis(logp, labels[:, None], axis=-1))
    mse = jnp.mean((lstm_logits.astype(jnp.float32) -
                    bert_logits.astype(jnp.float32)) ** 2)
    return a * ce + (1.0 - a) * mse


if __name__ == "__main__":
    key = jax.random.PRNGKey(0)
    k1, k2, k3 = jax.random.split(key, 3)

    # Primary small test (shapes consistent with the module: batch, num_class).
    batch, num_class = 8, 16
    lstm_logits = jax.random.normal(k1, (batch, num_class), dtype=jnp.float32)
    bert_logits = jax.random.normal(k2, (batch, num_class), dtype=jnp.float32)
    labels = jax.random.randint(k3, (batch,), 0, num_class, dtype=jnp.int32)

    loss = weighted_loss(lstm_logits, bert_logits, labels, a=0.5)
    loss = jax.block_until_ready(loss)
    ref = _reference(lstm_logits, bert_logits, labels, a=0.5)
    assert jnp.allclose(loss, ref, rtol=1e-5, atol=1e-5), (loss, ref)

    # Second check: batch not a multiple of 8 exercises the unpadded ragged path.
    k4, k5, k6 = jax.random.split(jax.random.PRNGKey(1), 3)
    batch2 = 13
    lstm2 = jax.random.normal(k4, (batch2, num_class), dtype=jnp.float32)
    bert2 = jax.random.normal(k5, (batch2, num_class), dtype=jnp.float32)
    labels2 = jax.random.randint(k6, (batch2,), 0, num_class, dtype=jnp.int32)

    loss2 = jax.block_until_ready(weighted_loss(lstm2, bert2, labels2, a=0.3))
    ref2 = _reference(lstm2, bert2, labels2, a=0.3)
    assert jnp.allclose(loss2, ref2, rtol=1e-5, atol=1e-5), (loss2, ref2)

    print("KERNEL_OK")
</pallas_src>

<mosaic_0001>
module attributes {stable_mosaic.version = 11 : i64} {
  func.func @_weighted_loss_kernel(%arg0: i32, %arg1: memref<8x16xf32, #tpu.memory_space<vmem>>, %arg2: memref<8x16xf32, #tpu.memory_space<vmem>>, %arg3: memref<8x1xi32, #tpu.memory_space<vmem>>, %arg4: memref<1x8x128xf32, #tpu.memory_space<vmem>>) attributes {dimension_semantics = [#tpu.dimension_semantics<parallel>], iteration_bounds = array<i64: 1>, scalar_prefetch = 0 : i64, scratch_operands = 0 : i64, tpu.core_type = #tpu.core_type<tc>, window_params = [{transform_indices = @transform_0, window_bounds = array<i64: 8, 16>}, {transform_indices = @transform_1, window_bounds = array<i64: 8, 16>}, {transform_indices = @transform_2, window_bounds = array<i64: 8, 1>}, {transform_indices = @transform_3, window_bounds = array<i64: 1, 8, 128>}]} {
    %0 = tpu.iota {dimensions = array<i32: 0>} : vector<8x1xi32>
    %c8_i32 = arith.constant 8 : i32
    %1 = arith.muli %arg0, %c8_i32 : i32
    %2 = vector.broadcast %1 : i32 to vector<8x1xi32>
    %3 = arith.addi %0, %2 : vector<8x1xi32>
    %c8_i32_0 = arith.constant 8 : i32
    %4 = vector.broadcast %c8_i32_0 : i32 to vector<8x1xi32>
    %5 = arith.cmpi slt, %3, %4 : vector<8x1xi32>
    %c0 = arith.constant 0 : index
    %c0_1 = arith.constant 0 : index
    %6 = vector.load %arg1[%c0, %c0_1] : memref<8x16xf32, #tpu.memory_space<vmem>>, vector<8x16xf32>
    %cst = arith.constant 0.000000e+00 : f32
    %7 = vector.shape_cast %5 : vector<8x1xi1> to vector<8x1xi1>
    %8 = vector.broadcast %7 : vector<8x1xi1> to vector<8x16xi1>
    %9 = vector.broadcast %cst : f32 to vector<8x16xf32>
    %10 = arith.select %8, %6, %9 : vector<8x16xi1>, vector<8x16xf32>
    %c0_2 = arith.constant 0 : index
    %c0_3 = arith.constant 0 : index
    %11 = vector.load %arg2[%c0_2, %c0_3] : memref<8x16xf32, #tpu.memory_space<vmem>>, vector<8x16xf32>
    %cst_4 = arith.constant 0.000000e+00 : f32
    %12 = vector.shape_cast %5 : vector<8x1xi1> to vector<8x1xi1>
    %13 = vector.broadcast %12 : vector<8x1xi1> to vector<8x16xi1>
    %14 = vector.broadcast %cst_4 : f32 to vector<8x16xf32>
    %15 = arith.select %13, %11, %14 : vector<8x16xi1>, vector<8x16xf32>
    %16 = arith.subf %10, %15 : vector<8x16xf32>
    %17 = arith.mulf %16, %16 : vector<8x16xf32>
    %18 = vector.shape_cast %17 : vector<8x16xf32> to vector<1x8x16xf32>
    %cst_5 = arith.constant dense<0.000000e+00> : vector<1xf32>
    %19 = vector.multi_reduction <add>, %18, %cst_5 [1, 2] : vector<1x8x16xf32> to vector<1xf32>
    %20 = vector.shape_cast %19 : vector<1xf32> to vector<1x1x1xf32>
    %21 = vector.extract %20[0, 0, 0] : f32 from vector<1x1x1xf32>
    %c0_6 = arith.constant 0 : index
    %c0_7 = arith.constant 0 : index
    %22 = vector.load %arg3[%c0_6, %c0_7] : memref<8x1xi32, #tpu.memory_space<vmem>>, vector<8x1xi32>
    %23 = tpu.iota {dimensions = array<i32: 1>} : vector<8x16xi32>
    %cst_8 = arith.constant dense<0xFF800000> : vector<8xf32>
    %24 = vector.multi_reduction <maximumf>, %10, %cst_8 [1] : vector<8x16xf32> to vector<8xf32>
    %25 = vector.shape_cast %24 : vector<8xf32> to vector<8x1xf32>
    %26 = vector.broadcast %25 : vector<8x1xf32> to vector<8x16xf32>
    %27 = arith.subf %10, %26 : vector<8x16xf32>
    %28 = math.exp %27 : vector<8x16xf32>
    %cst_9 = arith.constant dense<0.000000e+00> : vector<8xf32>
    %29 = vector.multi_reduction <add>, %28, %cst_9 [1] : vector<8x16xf32> to vector<8xf32>
    %30 = vector.shape_cast %29 : vector<8xf32> to vector<8x1xf32>
    %31 = math.log %30 : vector<8x1xf32>
    %32 = vector.broadcast %22 : vector<8x1xi32> to vector<8x16xi32>
    %33 = arith.cmpi eq, %23, %32 : vector<8x16xi32>
    %cst_10 = arith.constant 0.000000e+00 : f32
    %34 = vector.broadcast %cst_10 : f32 to vector<8x16xf32>
    %35 = arith.select %33, %27, %34 : vector<8x16xi1>, vector<8x16xf32>
    %cst_11 = arith.constant dense<0.000000e+00> : vector<8xf32>
    %36 = vector.multi_reduction <add>, %35, %cst_11 [1] : vector<8x16xf32> to vector<8xf32>
    %37 = vector.shape_cast %36 : vector<8xf32> to vector<8x1xf32>
    %38 = arith.subf %31, %37 : vector<8x1xf32>
    %cst_12 = arith.constant 0.000000e+00 : f32
    %39 = vector.broadcast %cst_12 : f32 to vector<8x1xf32>
    %40 = arith.select %5, %38, %39 : vector<8x1xi1>, vector<8x1xf32>
    %41 = vector.shape_cast %40 : vector<8x1xf32> to vector<1x8x1xf32>
    %cst_13 = arith.constant dense<0.000000e+00> : vector<1xf32>
    %42 = vector.multi_reduction <add>, %41, %cst_13 [1, 2] : vector<1x8x1xf32> to vector<1xf32>
    %43 = vector.shape_cast %42 : vector<1xf32> to vector<1x1x1xf32>
    %44 = vector.extract %43[0, 0, 0] : f32 from vector<1x1x1xf32>
    %45 = tpu.iota {dimensions = array<i32: 2>} : vector<1x8x128xi32>
    %c0_i32 = arith.constant 0 : i32
    %46 = vector.broadcast %c0_i32 : i32 to vector<1x8x128xi32>
    %47 = arith.cmpi eq, %45, %46 : vector<1x8x128xi32>
    %c1_i32 = arith.constant 1 : i32
    %48 = vector.broadcast %c1_i32 : i32 to vector<1x8x128xi32>
    %49 = arith.cmpi eq, %45, %48 : vector<1x8x128xi32>
    %cst_14 = arith.constant 0.000000e+00 : f32
    %50 = vector.broadcast %21 : f32 to vector<1x8x128xf32>
    %51 = vector.broadcast %cst_14 : f32 to vector<1x8x128xf32>
    %52 = arith.select %49, %50, %51 : vector<1x8x128xi1>, vector<1x8x128xf32>
    %53 = vector.broadcast %44 : f32 to vector<1x8x128xf32>
    %54 = arith.select %47, %53, %52 : vector<1x8x128xi1>, vector<1x8x128xf32>
    %c0_15 = arith.constant 0 : index
    %c0_16 = arith.constant 0 : index
    %c0_17 = arith.constant 0 : index
    %55 = vector.load %arg4[%c0_15, %c0_16, %c0_17] : memref<1x8x128xf32, #tpu.memory_space<vmem>>, vector<1x8x128xf32>
    tpu.vector_store %arg4[%c0_15, %c0_16, %c0_17], %54 {strides = array<i32>} : memref<1x8x128xf32, #tpu.memory_space<vmem>>, vector<1x8x128xf32>,
    return
  }
  func.func @transform_0(%arg0: i32) -> (i32, i32) {
    %c0_i32 = arith.constant 0 : i32
    %c0_i32_0 = arith.constant 0 : i32
    return %arg0, %c0_i32 : i32, i32
  }
  func.func @transform_1(%arg0: i32) -> (i32, i32) {
    %c0_i32 = arith.constant 0 : i32
    %c0_i32_0 = arith.constant 0 : i32
    return %arg0, %c0_i32 : i32, i32
  }
  func.func @transform_2(%arg0: i32) -> (i32, i32) {
    %c0_i32 = arith.constant 0 : i32
    %c0_i32_0 = arith.constant 0 : i32
    return %arg0, %c0_i32 : i32, i32
  }
  func.func @transform_3(%arg0: i32) -> (i32, i32, i32) {
    %c0_i32 = arith.constant 0 : i32
    %c0_i32_0 = arith.constant 0 : i32
    %c0_i32_1 = arith.constant 0 : i32
    return %arg0, %c0_i32, %c0_i32_0 : i32, i32, i32
  }
}

</mosaic_0001>

<llo_original>
// kernel: tpu_custom_call.1
$region0: #{tpu_custom_call.1}
  #allocation0 [shape = 'u32[]', space=smem, size = 0x4, offset = 0x4, fixed_abs, tag = 'smem constant byte address 0x4 - core index']
  #allocation1 [shape = 'u32[144,128]{1,0:T(1,128)}', space=vmem, size = 0x12000, scoped, tag = 'internal scratch']
  %s0 = inlined_call_operand.vmem [shape: f32[8,16], index: 0, kind: input, shape index: {}]
  %s1 = inlined_call_operand.hbm [shape: f32[8,16], index: 1, kind: input, shape index: {}]
  %s2 = inlined_call_operand.vmem [shape: s32[8,1], index: 2, kind: input, shape index: {}]
  %s3 = inlined_call_operand.hbm [shape: f32[1,8,128], index: 3, kind: output, shape index: {}]
  %s4 = sld [smem:[#allocation0]]
  $region26: #{tpu_custom_call.1} parent=0
    _
  %s6 = ssub.s32 1, %s4
  %s7 = scalar_select 0, %s6, %s4
  $region1: #{tpu_custom_call.1} parent=0
    #allocation2 [shape = 'u8[4096]{0}', space=vmem, size = 0x1000, scoped, tag = 'input window, operand 1, single buffered']
    #allocation3 [shape = 's32[1]{0}', space=sflag, size = 0x4, scoped, tag = 'scoped memory for tpu_custom_call.1']
    #allocation4 [shape = 's32[1]{0}', space=sflag, size = 0x4, scoped, tag = 'scoped memory for tpu_custom_call.1']
    #allocation5 [shape = 'u8[4096]{0}', space=vmem, size = 0x1000, scoped, tag = 'output window, operand 0, single buffered']
    %8 = vsyncpa [#allocation3], 0
    %9 = vsyncpa [#allocation4], 0
    // Predicated region
    $region2: #{tpu_custom_call.1} parent=1 // pred_check
      _
    $region3: #{tpu_custom_call.1} parent=1 // pred_check_branch
      %11 = sbr.rel (0) target = $region5
    $region4: #{tpu_custom_call.1} parent=1 // pred_region
      _
    $region5: #{tpu_custom_call.1} parent=1 // pred_fallthru
      _
    // Predicated region
    $region6: #{tpu_custom_call.1} parent=1 // pred_check
      _
    $region7: #{tpu_custom_call.1} parent=1 // pred_check_branch
      %13 = sbr.rel (0) target = $region9
    $region8: #{tpu_custom_call.1} parent=1 // pred_region
      %s15 = ssub.s32 128, 128
      %16 = vsyncadd [#allocation3], %s15
      %s18 = sshll.u32 [#allocation2], 4
      %s19 = int_to_ptr.vmem [resolvable:$true] %s18
      %21 = dma.hbm_to_vmem [thread:$0]  %s1, 128, %s19, [#allocation3]
    $region9: #{tpu_custom_call.1} parent=1 // pred_fallthru
      _
    // Predicated region
    $region10: #{tpu_custom_call.1} parent=1 // pred_check
      _
    $region11: #{tpu_custom_call.1} parent=1 // pred_check_branch
      %23 = sbr.rel (0) target = $region13
    $region12: #{tpu_custom_call.1} parent=1 // pred_region
      _
    $region13: #{tpu_custom_call.1} parent=1 // pred_fallthru
      _
    // Predicated region
    $region14: #{tpu_custom_call.1} parent=1 // pred_check
      _
    $region15: #{tpu_custom_call.1} parent=1 // pred_check_branch
      %25 = sbr.rel (0) target = $region17
    $region16: #{tpu_custom_call.1} parent=1 // pred_region
      %26 = dma.done [#allocation3], 128
    $region17: #{tpu_custom_call.1} parent=1 // pred_fallthru
      _
    %v27 = vlaneseq
    %v28 = vshrl.u32 %v27, 7
    %s29 = smul.u32 0, 8
    %v30 = vstv %s29
    %v31 = vadd.s32 %v28, %v30
    %vm32 = vcmp.lt.s32.totalorder %v31, 8
    %v33 = vld [vmem:[%s0] sm:$0xff]
    %v34 = vsel %vm32, 1, 0
    %vm35 = vcmp.eq.s32.totalorder %v34, 1
    %v36 = vsel %vm35, %v33, 0.0
    %v37 = vld [vmem:[#allocation2] sm:$0xff]
    %v38 = vsel %vm35, %v37, 0.0
    %v39 = vsub.f32 %v36, %v38
    %v40 = vmul.f32 %v39, %v39
    %vm41 = vcmask 130048
    %v42 = vsel %vm41, %v40, 0.0
    %43 = vadd.xlane.f32.xlu0 %v42
    %v44 = vpop.xlane.xlu0 %43
    %v45 = vrot.slane %v44, 4
    %v46 = vadd.f32 %v44, %v45
    %v47 = vrot.slane %v46, 2
    %v48 = vadd.f32 %v46, %v47
    %v49 = vrot.slane %v48, 1
    %v50 = vadd.f32 %v48, %v49
    %s51 = vtos %v50
    %v52 = vld [vmem:[%s2] sm:$0xff]
    %v53 = vlaneseq
    %v54 = vand.u32 %v53, 127
    %v55 = vsel %vm41, %v36, -inf
    %56 = vmax.xlane.f32.xlu0 %v55
    %v57 = vpop.xlane.xlu0 %56
    %v58 = vsub.f32 %v36, %v57
    %v59 = vmul.f32 %v58, 1.442695
    %v60 = vpow.pop %v59
    %v61 = vsel %vm41, %v60, 0.0
    %62 = vadd.xlane.f32.xlu0 %v61
    %v63 = vpop.xlane.xlu0 %62
    %v64 = vlog2.pop %v63
    %v65 = vmul.f32 %v64, 0.6931472
    %66 = vset.pattern.permute.xlu0 0
    %67 = vperm.xlu0 %66, %v52
    %v68 = vpop.permute.xlu0 %67
    %vm69 = vcmp.eq.s32.totalorder %v54, %v68
    %v70 = vsel %vm69, %v58, 0.0
    %v71 = vsel %vm41, %v70, 0.0
    %72 = vadd.xlane.f32.xlu0 %v71
    %v73 = vpop.xlane.xlu0 %72
    %v74 = vsub.f32 %v65, %v73
    %v75 = vsel %vm32, %v74, 0.0
    %vm76 = vcmask 7168
    %v77 = vsel %vm76, %v75, 0.0
    %78 = vadd.xlane.f32.xlu0 %v77
    %v79 = vpop.xlane.xlu0 %78
    %v80 = vrot.slane %v79, 4
    %v81 = vadd.f32 %v79, %v80
    %v82 = vrot.slane %v81, 2
    %v83 = vadd.f32 %v81, %v82
    %v84 = vrot.slane %v83, 1
    %v85 = vadd.f32 %v83, %v84
    %s86 = vtos %v85
    %vm87 = vcmp.eq.s32.totalorder %v54, 0
    %vm88 = vcmp.eq.s32.totalorder %v54, 1
    %v89 = vstv %s51
    %v90 = vsel %vm88, %v89, 0.0
    %v91 = vstv %s86
    %v92 = vsel %vm87, %v91, %v90
    %93 = vst [vmem:[#allocation5] sm:$0xff] %v92
    // Predicated region
    $region18: #{tpu_custom_call.1} parent=1 // pred_check
      _
    $region19: #{tpu_custom_call.1} parent=1 // pred_check_branch
      %95 = sbr.rel (0) target = $region21
    $region20: #{tpu_custom_call.1} parent=1 // pred_region
      %s97 = ssub.s32 128, 128
      %98 = vsyncadd [#allocation4], %s97
      %s100 = sshll.u32 [#allocation5], 4
      %s101 = int_to_ptr.vmem [resolvable:$true] %s100
      %103 = dma.vmem_to_hbm [thread:$0]  %s101, 128, %s3, [#allocation4]
    $region21: #{tpu_custom_call.1} parent=1 // pred_fallthru
      _
    // Predicated region
    $region22: #{tpu_custom_call.1} parent=1 // pred_check
      _
    $region23: #{tpu_custom_call.1} parent=1 // pred_check_branch
      %105 = sbr.rel (0) target = $region25
    $region24: #{tpu_custom_call.1} parent=1 // pred_region
      %106 = dma.done [#allocation4], 128
    $region25: #{tpu_custom_call.1} parent=1 // pred_fallthru
      _
    %107 = vsyncpa [#allocation3], 1
    %108 = vsyncpa [#allocation4], 1

</llo_original>
